<compile_context>
chip_gen: v7x
topology: tpu7x:2x2x1
jax: 0.10.0
libtpu: 0.0.40
codegen_flags: <defaults>
</compile_context>

<pallas_src>
import functools
import math

import jax
import jax.numpy as jnp
from jax import lax
from jax.experimental import pallas as pl
from jax.experimental.pallas import tpu as pltpu


def _round_up(x, m):
    return (x + m - 1) // m * m


def _sublane(itemsize):
    # Minimum sublane tile per dtype width (f32: 8, bf16: 16, int8/fp8: 32).
    return {4: 8, 2: 16, 1: 32}.get(itemsize, 8)


def _hs_block_bytes(b_blk, t_blk, D, itemsize):
    # Padded VMEM footprint of one hidden_states block.
    return b_blk * _round_up(t_blk, _sublane(itemsize)) * _round_up(D, 128) * itemsize


def _tpu_vmem_and_cores():
    """Generation-aware VMEM capacity + multi-TensorCore hint."""
    vmem = None
    try:
        info = pltpu.get_tpu_info()
        vmem = int(getattr(info, "vmem_capacity_bytes", 0)) or None
    except Exception:
        vmem = None
    if vmem is None:
        # Unknown: assume v7x-sized VMEM (most conservative) and 2 TensorCores.
        return 64 * 1024 * 1024, True
    # v7x has 64 MiB VMEM per TensorCore and 2 TCs/chip; v5e/v6e have 128 MiB, 1 TC.
    multi_core = vmem <= 96 * 1024 * 1024
    return vmem, multi_core


def _attn_pool_kernel(bias_ref, hs_ref, mask_ref, w_ref, out_ref,
                      acc_ref, m_ref, l_ref, *, t_total, t_blk, ragged_t):
    # bias_ref : [1] f32 SMEM, already holds attn_proj.bias * scale * log(T)
    # hs_ref   : [Bb, Tb, D]  (f32 or bf16)
    # mask_ref : [Bb, 1, Tb]  bf16 (1 = keep, 0 = pad) -- lane-dense over T
    # w_ref    : [1, 1, D]    hs.dtype, pre-scaled attn_proj weight -- lane-dense over D
    # out_ref  : [Bb, 1, D]   f32
    # acc_ref  : [Bb, 1, D]   f32 scratch (unnormalized pooled accumulator)
    # m_ref    : [Bb, 1, 1]   f32 scratch (running max)
    # l_ref    : [Bb, 1, 1]   f32 scratch (running softmax denominator)
    t_idx = pl.program_id(1)
    nt = pl.num_programs(1)

    @pl.when(t_idx == 0)
    def _init():
        acc_ref[...] = jnp.zeros_like(acc_ref)
        m_ref[...] = jnp.full_like(m_ref, -jnp.inf)
        l_ref[...] = jnp.zeros_like(l_ref)

    if ragged_t:
        # Only the LAST T block is ragged: zero its out-of-range rows in place
        # so stale VMEM padding (possibly NaN/Inf) can never leak into the MXU
        # accumulation.  Static slice, executed on one block only.
        t_rem = t_total % t_blk

        @pl.when(t_idx == nt - 1)
        def _scrub():
            bb_, _, d_ = hs_ref.shape
            hs_ref[:, t_rem:, :] = jnp.zeros(
                (bb_, t_blk - t_rem, d_), hs_ref.dtype)

    hs = hs_ref[...]                       # [Bb, Tb, D], native dtype (bf16 ok)
    mask = mask_ref[...]                   # [Bb, 1, Tb] bf16
    bb, tb, d = hs.shape

    # scaled_scores = (hs @ (W*f)^T) + b*f  ->  [Bb, 1, Tb]  (lane-dense, MXU)
    w = jnp.broadcast_to(w_ref[...], (bb, 1, d))
    scores = jnp.einsum('bod,btd->bot', w, hs,
                        preferred_element_type=jnp.float32)
    scores = scores + bias_ref[0]
    # masked_fill(mask == 0, -1e9)
    scores = jnp.where(mask == 0, jnp.float32(-1.0e9), scores)
    if ragged_t:
        # Out-of-range T columns: push far below the -1e9 mask fill so they get
        # exactly zero softmax weight (even for fully-masked rows).  Cheap: the
        # iota/select lives on the tiny [Bb, 1, Tb] score tile.
        t_pos = lax.broadcasted_iota(jnp.int32, scores.shape, 2) + t_idx * t_blk
        scores = jnp.where(t_pos < t_total, scores, jnp.float32(-1.0e30))

    # Online softmax accumulation across T blocks (degenerates to a single
    # pass when the whole sequence fits in one block).
    m_prev = m_ref[...]                                        # [Bb, 1, 1]
    m_new = jnp.maximum(m_prev, jnp.max(scores, axis=-1, keepdims=True))
    alpha = jnp.exp(m_prev - m_new)
    p = jnp.exp(scores - m_new)                                # [Bb, 1, Tb]
    l_ref[...] = alpha * l_ref[...] + jnp.sum(p, axis=-1, keepdims=True)
    # Unnormalized pooled sum via MXU: [Bb,1,Tb] @ [Bb,Tb,D] -> [Bb,1,D].
    acc_ref[...] = alpha * acc_ref[...] + jnp.einsum(
        'bot,btd->bod', p.astype(hs.dtype), hs,
        preferred_element_type=jnp.float32)
    m_ref[...] = m_new

    @pl.when(t_idx == nt - 1)
    def _finalize():
        # Exact reciprocal: runs once per B block on [Bb,1,1] values.
        inv_l = pl.reciprocal(l_ref[...], approx=False)
        out_ref[...] = (acc_ref[...] * inv_l).astype(out_ref.dtype)


def _choose_blocks(B, T, D, itemsize, vmem_bytes, multi_core):
    # ~42% of physical VMEM for the double-buffered hidden_states stream:
    # ~27 MiB on v7x (64 MiB/TC), ~54 MiB on v5e/v6e (128 MiB).
    hs_budget = int(vmem_bytes * 0.42)
    full_t_cost = 2 * _hs_block_bytes(1, T, D, itemsize)
    if full_t_cost <= hs_budget:
        t_blk = T
        d_pad4 = 8 * _round_up(D, 128) * 4
        t_pad4 = 8 * _round_up(T, 128) * 4
        # Per-batch VMEM footprint (hs db + out db + acc + mask db + m/l).
        per_b = (full_t_cost
                 + 3 * d_pad4                  # out (x2) + acc
                 + 2 * t_pad4                  # mask (x2), bounded at f32 size
                 + 2 * 8 * 128 * 4)            # m, l
        b_blk = max(1, min(B, hs_budget // max(per_b, 1)))
        if multi_core and B >= 2:
            # Keep >= 2 grid steps along B only on chips with 2 TensorCores.
            b_blk = min(b_blk, B // 2)
        while B % b_blk:                       # largest divisor of B <= b_blk
            b_blk -= 1
    else:
        # Whole-T block would blow the VMEM budget: tile T (online softmax).
        b_blk = 1
        max_t = hs_budget // (2 * _round_up(D, 128) * itemsize)
        t_blk = max(128, max_t // 128 * 128)
        t_blk = min(t_blk, _round_up(T, 128))
        if T % t_blk:
            # Bias toward divisors of T so the ragged last block disappears.
            cand = (t_blk // 128) * 128
            while cand >= max(128, t_blk // 2):
                if T % cand == 0:
                    t_blk = cand
                    break
                cand -= 128
    return b_blk, t_blk


def _vmem_limit_bytes(b_blk, t_blk, D, itemsize, vmem_bytes):
    d_pad = _round_up(D, 128)
    t_pad = _round_up(t_blk, 128)
    need = (2 * _hs_block_bytes(b_blk, t_blk, D, itemsize)  # hs (double-buffered, padded)
            + 2 * b_blk * 8 * t_pad * 4                     # mask (double-buffered, bound)
            + 2 * 8 * d_pad * 4                             # weight (double-buffered)
            + 2 * b_blk * 8 * d_pad * 4                     # out (double-buffered)
            + b_blk * 8 * d_pad * 4                         # acc scratch
            + 2 * b_blk * 8 * 128 * 4)                      # m / l scratch
    cap = max(32 << 20, int(vmem_bytes * 0.85))             # ~54 MiB v7x, ~108 MiB v5e/v6e
    return int(max(32 << 20, min(need + (4 << 20), cap)))


def attention_pooling(hidden_states, attention_mask=None, w=None, b=None,
                      scale=None, *, block_b=None, block_t=None):
    """Pallas TPU forward of AttentionPooling.

    hidden_states : [B, T, D] float32 or bfloat16
    attention_mask: [B, T] (1 = keep, 0 = pad) or None
    w             : [1, D] attn_proj weight (nn.Linear(D, 1).weight layout)
    b             : [1]    attn_proj bias
    scale         : scalar learned scale parameter
    Returns pooled: [B, D] float32.
    """
    B, T, D = hidden_states.shape
    if attention_mask is None:
        attention_mask = jnp.ones((B, T), jnp.float32)
    itemsize = jnp.dtype(hidden_states.dtype).itemsize

    vmem_bytes, multi_core = _tpu_vmem_and_cores()
    b_blk, t_blk = _choose_blocks(B, T, D, itemsize, vmem_bytes, multi_core)
    if block_b is not None:
        b_blk = block_b
    if block_t is not None:
        t_blk = block_t
    assert B % b_blk == 0, "batch block must divide B"
    assert t_blk == T or t_blk % 128 == 0, "tiled T blocks must be multiples of 128"
    nb = B // b_blk
    nt = pl.cdiv(T, t_blk)
    ragged_t = (T % t_blk) != 0

    # Fold scale * log(T_full) into both weight and bias on the host so the
    # kernel never multiplies by the scale; pre-cast the weight to the
    # activation dtype so the kernel never casts it either.
    factor = jnp.asarray(scale, jnp.float32) * math.log(T)
    w3 = (jnp.asarray(w, jnp.float32).reshape(1, 1, D) * factor).astype(
        hidden_states.dtype)                                       # lane-dense over D
    bias = (jnp.asarray(b, jnp.float32).reshape(1) * factor).astype(jnp.float32)
    mask3 = attention_mask.reshape(B, 1, T).astype(jnp.bfloat16)   # lane-dense over T

    kernel = functools.partial(_attn_pool_kernel, t_total=T, t_blk=t_blk,
                               ragged_t=ragged_t)

    out = pl.pallas_call(
        kernel,
        out_shape=jax.ShapeDtypeStruct((B, 1, D), jnp.float32),
        grid_spec=pltpu.PrefetchScalarGridSpec(
            num_scalar_prefetch=0,
            grid=(nb, nt),
            in_specs=[
                pl.BlockSpec(memory_space=pltpu.MemorySpace.SMEM),            # bias*scale*logT [1]
                pl.BlockSpec((b_blk, t_blk, D), lambda bi, ti: (bi, ti, 0)),  # hidden_states
                pl.BlockSpec((b_blk, 1, t_blk), lambda bi, ti: (bi, 0, ti)),  # mask (lane-dense T)
                pl.BlockSpec((1, 1, D), lambda bi, ti: (0, 0, 0)),            # scaled attn_proj weight
            ],
            out_specs=pl.BlockSpec((b_blk, 1, D), lambda bi, ti: (bi, 0, 0)),
            scratch_shapes=[
                pltpu.VMEM((b_blk, 1, D), jnp.float32),   # pooled accumulator
                pltpu.VMEM((b_blk, 1, 1), jnp.float32),   # running max
                pltpu.VMEM((b_blk, 1, 1), jnp.float32),   # running denominator
            ],
        ),
        compiler_params=pltpu.CompilerParams(
            dimension_semantics=("parallel", "arbitrary"),
            vmem_limit_bytes=_vmem_limit_bytes(b_blk, t_blk, D, itemsize, vmem_bytes),
        ),
    )(bias, hidden_states, mask3, w3)
    # [B,1,D] -> [B,D] squeeze is free in HBM (contiguous layout).
    return out[:, 0, :]


def attention_pooling_ref(hidden_states, attention_mask, w, b, scale):
    """Pure-JAX reference mirroring the PyTorch forward."""
    B, T, D = hidden_states.shape
    hs = hidden_states.astype(jnp.float32)
    raw = jnp.einsum('btd,od->bto', hs, jnp.asarray(w, jnp.float32))
    raw = raw + jnp.asarray(b, jnp.float32)
    scaled = raw * (jnp.asarray(scale, jnp.float32) * math.log(T))
    m = attention_mask[..., None]
    scaled = jnp.where(m == 0.0, -1.0e9, scaled)
    attn_weights = jax.nn.softmax(scaled, axis=1)
    return jnp.sum(attn_weights * hs, axis=1)


if __name__ == "__main__":
    expected_seq_len = 32
    key = jax.random.PRNGKey(0)
    k_hs, k_w, k_b, k_hs2, k_w2, k_b2 = jax.random.split(key, 6)

    # --- Test 1: small shape, f32, whole-T block --------------------------
    B, T, D = 2, 8, 32
    hidden_states = jax.random.normal(k_hs, (B, T, D), jnp.float32)
    attention_mask = jnp.ones((B, T), jnp.float32).at[1, T - 3:].set(0.0)
    bound = 1.0 / math.sqrt(D)
    w = jax.random.uniform(k_w, (1, D), jnp.float32, -bound, bound)   # nn.Linear(D,1).weight
    b = jax.random.uniform(k_b, (1,), jnp.float32, -bound, bound)
    scale = jnp.array(1.0 / math.log(expected_seq_len), jnp.float32)

    pooled = attention_pooling(hidden_states, attention_mask, w, b, scale)
    pooled = jax.block_until_ready(pooled)
    ref = attention_pooling_ref(hidden_states, attention_mask, w, b, scale)
    assert pooled.shape == (B, D)
    assert jnp.allclose(pooled, ref, atol=2e-3, rtol=2e-3), "f32 mismatch vs reference"

    # --- Test 2: bf16 activations (bandwidth path) ------------------------
    pooled_bf16 = attention_pooling(hidden_states.astype(jnp.bfloat16),
                                    attention_mask, w, b, scale)
    pooled_bf16 = jax.block_until_ready(pooled_bf16)
    assert jnp.allclose(pooled_bf16, ref, atol=5e-2, rtol=5e-2), "bf16 mismatch vs reference"

    # --- Test 3: multi-batch blocks + tiled (ragged) T, online softmax ----
    B2, T2, D2 = 4, 320, 128
    hs2 = jax.random.normal(k_hs2, (B2, T2, D2), jnp.float32)
    mask2 = (jnp.ones((B2, T2), jnp.float32)
             .at[2, 200:].set(0.0)
             .at[3, 10:].set(0.0))
    bound2 = 1.0 / math.sqrt(D2)
    w2 = jax.random.uniform(k_w2, (1, D2), jnp.float32, -bound2, bound2)
    b2 = jax.random.uniform(k_b2, (1,), jnp.float32, -bound2, bound2)
    ref2 = attention_pooling_ref(hs2, mask2, w2, b2, scale)

    # Forced ragged-T online-softmax path.
    pooled2 = attention_pooling(hs2, mask2, w2, b2, scale, block_b=2, block_t=128)
    pooled2 = jax.block_until_ready(pooled2)
    assert pooled2.shape == (B2, D2)
    assert jnp.allclose(pooled2, ref2, atol=5e-3, rtol=5e-3), "tiled-T mismatch vs reference"

    # Auto-chosen blocks (generation-aware whole-T path).
    pooled2_auto = attention_pooling(hs2, mask2, w2, b2, scale)
    pooled2_auto = jax.block_until_ready(pooled2_auto)
    assert jnp.allclose(pooled2_auto, ref2, atol=5e-3, rtol=5e-3), "auto-block mismatch vs reference"

    print("KERNEL_OK")
</pallas_src>

<mosaic_0001>
module attributes {stable_mosaic.version = 11 : i64} {
  func.func @_attn_pool_kernel(%arg0: i32, %arg1: i32, %arg2: memref<1xf32, #tpu.memory_space<smem>>, %arg3: memref<1x8x32xf32, #tpu.memory_space<vmem>>, %arg4: memref<1x1x8xbf16, #tpu.memory_space<vmem>>, %arg5: memref<1x1x32xf32, #tpu.memory_space<vmem>>, %arg6: memref<1x1x32xf32, #tpu.memory_space<vmem>>, %arg7: memref<1x1x32xf32, #tpu.memory_space<vmem>>, %arg8: memref<1x1x1xf32, #tpu.memory_space<vmem>>, %arg9: memref<1x1x1xf32, #tpu.memory_space<vmem>>) attributes {dimension_semantics = [#tpu.dimension_semantics<parallel>, #tpu.dimension_semantics<arbitrary>], iteration_bounds = array<i64: 2, 1>, scalar_prefetch = 0 : i64, scratch_operands = 3 : i64, tpu.core_type = #tpu.core_type<tc>, window_params = [{transform_indices = @transform_0, window_bounds = array<i64: 1>}, {transform_indices = @transform_1, window_bounds = array<i64: 1, 8, 32>}, {transform_indices = @transform_2, window_bounds = array<i64: 1, 1, 8>}, {pipeline_mode = #tpu.pipeline_mode<synchronous>, transform_indices = @transform_3, window_bounds = array<i64: 1, 1, 32>}, {transform_indices = @transform_4, window_bounds = array<i64: 1, 1, 32>}]} {
    %c0_i32 = arith.constant 0 : i32
    %0 = arith.cmpi eq, %arg1, %c0_i32 : i32
    %1 = arith.extui %0 : i1 to i32
    %c0_i32_0 = arith.constant 0 : i32
    %2 = arith.cmpi ne, %1, %c0_i32_0 : i32
    scf.if %2 {
      %cst_35 = arith.constant 0.000000e+00 : f32
      %39 = vector.broadcast %cst_35 : f32 to vector<1x1x32xf32>
      %c0_36 = arith.constant 0 : index
      %c0_37 = arith.constant 0 : index
      %c0_38 = arith.constant 0 : index
      %40 = vector.load %arg7[%c0_36, %c0_37, %c0_38] : memref<1x1x32xf32, #tpu.memory_space<vmem>>, vector<1x1x32xf32>
      tpu.vector_store %arg7[%c0_36, %c0_37, %c0_38], %39 {strides = array<i32>} : memref<1x1x32xf32, #tpu.memory_space<vmem>>, vector<1x1x32xf32>,
      %cst_39 = arith.constant 0xFF800000 : f32
      %41 = vector.broadcast %cst_39 : f32 to vector<1x1x1xf32>
      %c0_40 = arith.constant 0 : index
      %c0_41 = arith.constant 0 : index
      %c0_42 = arith.constant 0 : index
      %42 = vector.load %arg8[%c0_40, %c0_41, %c0_42] : memref<1x1x1xf32, #tpu.memory_space<vmem>>, vector<1x1x1xf32>
      tpu.vector_store %arg8[%c0_40, %c0_41, %c0_42], %41 {strides = array<i32>} : memref<1x1x1xf32, #tpu.memory_space<vmem>>, vector<1x1x1xf32>,
      %cst_43 = arith.constant 0.000000e+00 : f32
      %43 = vector.broadcast %cst_43 : f32 to vector<1x1x1xf32>
      %c0_44 = arith.constant 0 : index
      %c0_45 = arith.constant 0 : index
      %c0_46 = arith.constant 0 : index
      %44 = vector.load %arg9[%c0_44, %c0_45, %c0_46] : memref<1x1x1xf32, #tpu.memory_space<vmem>>, vector<1x1x1xf32>
      tpu.vector_store %arg9[%c0_44, %c0_45, %c0_46], %43 {strides = array<i32>} : memref<1x1x1xf32, #tpu.memory_space<vmem>>, vector<1x1x1xf32>,
    } else {
    }
    %c0 = arith.constant 0 : index
    %c0_1 = arith.constant 0 : index
    %c0_2 = arith.constant 0 : index
    %3 = vector.load %arg3[%c0, %c0_1, %c0_2] : memref<1x8x32xf32, #tpu.memory_space<vmem>>, vector<1x8x32xf32>
    %c0_3 = arith.constant 0 : index
    %c0_4 = arith.constant 0 : index
    %c0_5 = arith.constant 0 : index
    %4 = vector.load %arg4[%c0_3, %c0_4, %c0_5] : memref<1x1x8xbf16, #tpu.memory_space<vmem>>, vector<1x1x8xbf16>
    %c0_6 = arith.constant 0 : index
    %c0_7 = arith.constant 0 : index
    %c0_8 = arith.constant 0 : index
    %5 = vector.load %arg5[%c0_6, %c0_7, %c0_8] : memref<1x1x32xf32, #tpu.memory_space<vmem>>, vector<1x1x32xf32>
    "tpu.trace_start"() <{level = 10 : i32, message = "bod,btd->bot"}> : () -> ()
    %cst = arith.constant dense<0.000000e+00> : vector<1x1x8xf32>
    %6 = tpu.matmul %5, %3, %cst {dimension_numbers = #tpu.dot_dimension_numbers<[2], [2], [1], [1], [0, 0, 0, 1, 1, 1], [0], [0]>} : vector<1x1x32xf32>, vector<1x8x32xf32>, vector<1x1x8xf32> -> vector<1x1x8xf32>
    "tpu.trace_stop"() : () -> ()
    %c0_9 = arith.constant 0 : index
    %7 = memref.load %arg2[%c0_9] : memref<1xf32, #tpu.memory_space<smem>>
    %8 = vector.broadcast %7 : f32 to vector<1x1x8xf32>
    %9 = arith.addf %6, %8 : vector<1x1x8xf32>
    %cst_10 = arith.constant 0.000000e+00 : bf16
    %10 = vector.broadcast %cst_10 : bf16 to vector<1x1x8xbf16>
    %11 = arith.cmpf oeq, %4, %10 : vector<1x1x8xbf16>
    %cst_11 = arith.constant -1.000000e+09 : f32
    %12 = vector.broadcast %cst_11 : f32 to vector<1x1x8xf32>
    %13 = arith.select %11, %12, %9 : vector<1x1x8xi1>, vector<1x1x8xf32>
    %c0_12 = arith.constant 0 : index
    %c0_13 = arith.constant 0 : index
    %c0_14 = arith.constant 0 : index
    %14 = vector.load %arg8[%c0_12, %c0_13, %c0_14] : memref<1x1x1xf32, #tpu.memory_space<vmem>>, vector<1x1x1xf32>
    %cst_15 = arith.constant dense<0xFF800000> : vector<1x1xf32>
    %15 = vector.multi_reduction <maximumf>, %13, %cst_15 [2] : vector<1x1x8xf32> to vector<1x1xf32>
    %16 = vector.shape_cast %15 : vector<1x1xf32> to vector<1x1x1xf32>
    %17 = arith.maximumf %14, %16 : vector<1x1x1xf32>
    %18 = arith.subf %14, %17 : vector<1x1x1xf32>
    %19 = math.exp %18 : vector<1x1x1xf32>
    %20 = vector.broadcast %17 : vector<1x1x1xf32> to vector<1x1x8xf32>
    %21 = arith.subf %13, %20 : vector<1x1x8xf32>
    %22 = math.exp %21 : vector<1x1x8xf32>
    %c0_16 = arith.constant 0 : index
    %c0_17 = arith.constant 0 : index
    %c0_18 = arith.constant 0 : index
    %23 = vector.load %arg9[%c0_16, %c0_17, %c0_18] : memref<1x1x1xf32, #tpu.memory_space<vmem>>, vector<1x1x1xf32>
    %24 = arith.mulf %19, %23 : vector<1x1x1xf32>
    %cst_19 = arith.constant dense<0.000000e+00> : vector<1x1xf32>
    %25 = vector.multi_reduction <add>, %22, %cst_19 [2] : vector<1x1x8xf32> to vector<1x1xf32>
    %26 = vector.shape_cast %25 : vector<1x1xf32> to vector<1x1x1xf32>
    %27 = arith.addf %24, %26 : vector<1x1x1xf32>
    %c0_20 = arith.constant 0 : index
    %c0_21 = arith.constant 0 : index
    %c0_22 = arith.constant 0 : index
    %28 = vector.load %arg9[%c0_20, %c0_21, %c0_22] : memref<1x1x1xf32, #tpu.memory_space<vmem>>, vector<1x1x1xf32>
    tpu.vector_store %arg9[%c0_20, %c0_21, %c0_22], %27 {strides = array<i32>} : memref<1x1x1xf32, #tpu.memory_space<vmem>>, vector<1x1x1xf32>,
    %c0_23 = arith.constant 0 : index
    %c0_24 = arith.constant 0 : index
    %c0_25 = arith.constant 0 : index
    %29 = vector.load %arg7[%c0_23, %c0_24, %c0_25] : memref<1x1x32xf32, #tpu.memory_space<vmem>>, vector<1x1x32xf32>
    %30 = vector.broadcast %19 : vector<1x1x1xf32> to vector<1x1x32xf32>
    %31 = arith.mulf %30, %29 : vector<1x1x32xf32>
    "tpu.trace_start"() <{level = 10 : i32, message = "bot,btd->bod"}> : () -> ()
    %cst_26 = arith.constant dense<0.000000e+00> : vector<1x1x32xf32>
    %32 = tpu.matmul %22, %3, %cst_26 {dimension_numbers = #tpu.dot_dimension_numbers<[2], [1], [1], [2], [0, 0, 0, 1, 1, 2], [0], [0]>} : vector<1x1x8xf32>, vector<1x8x32xf32>, vector<1x1x32xf32> -> vector<1x1x32xf32>
    "tpu.trace_stop"() : () -> ()
    %33 = arith.addf %31, %32 : vector<1x1x32xf32>
    %c0_27 = arith.constant 0 : index
    %c0_28 = arith.constant 0 : index
    %c0_29 = arith.constant 0 : index
    %34 = vector.load %arg7[%c0_27, %c0_28, %c0_29] : memref<1x1x32xf32, #tpu.memory_space<vmem>>, vector<1x1x32xf32>
    tpu.vector_store %arg7[%c0_27, %c0_28, %c0_29], %33 {strides = array<i32>} : memref<1x1x32xf32, #tpu.memory_space<vmem>>, vector<1x1x32xf32>,
    %c0_30 = arith.constant 0 : index
    %c0_31 = arith.constant 0 : index
    %c0_32 = arith.constant 0 : index
    %35 = vector.load %arg8[%c0_30, %c0_31, %c0_32] : memref<1x1x1xf32, #tpu.memory_space<vmem>>, vector<1x1x1xf32>
    tpu.vector_store %arg8[%c0_30, %c0_31, %c0_32], %17 {strides = array<i32>} : memref<1x1x1xf32, #tpu.memory_space<vmem>>, vector<1x1x1xf32>,
    %c0_i32_33 = arith.constant 0 : i32
    %36 = arith.cmpi eq, %arg1, %c0_i32_33 : i32
    %37 = arith.extui %36 : i1 to i32
    %c0_i32_34 = arith.constant 0 : i32
    %38 = arith.cmpi ne, %37, %c0_i32_34 : i32
    scf.if %38 {
      %c0_35 = arith.constant 0 : index
      %c0_36 = arith.constant 0 : index
      %c0_37 = arith.constant 0 : index
      %39 = vector.load %arg9[%c0_35, %c0_36, %c0_37] : memref<1x1x1xf32, #tpu.memory_space<vmem>>, vector<1x1x1xf32>
      %40 = tpu.reciprocal %39 : vector<1x1x1xf32> -> vector<1x1x1xf32>
      %c0_38 = arith.constant 0 : index
      %c0_39 = arith.constant 0 : index
      %c0_40 = arith.constant 0 : index
      %41 = vector.load %arg7[%c0_38, %c0_39, %c0_40] : memref<1x1x32xf32, #tpu.memory_space<vmem>>, vector<1x1x32xf32>
      %42 = vector.broadcast %40 : vector<1x1x1xf32> to vector<1x1x32xf32>
      %43 = arith.mulf %41, %42 : vector<1x1x32xf32>
      %c0_41 = arith.constant 0 : index
      %c0_42 = arith.constant 0 : index
      %c0_43 = arith.constant 0 : index
      %44 = vector.load %arg6[%c0_41, %c0_42, %c0_43] : memref<1x1x32xf32, #tpu.memory_space<vmem>>, vector<1x1x32xf32>
      tpu.vector_store %arg6[%c0_41, %c0_42, %c0_43], %43 {strides = array<i32>} : memref<1x1x32xf32, #tpu.memory_space<vmem>>, vector<1x1x32xf32>,
    } else {
    }
    return
  }
  func.func @transform_0(%arg0: i32, %arg1: i32) -> i32 {
    %c0_i32 = arith.constant 0 : i32
    %c0_i32_0 = arith.constant 0 : i32
    return %c0_i32 : i32
  }
  func.func @transform_1(%arg0: i32, %arg1: i32) -> (i32, i32, i32) {
    %c0_i32 = arith.constant 0 : i32
    %c0_i32_0 = arith.constant 0 : i32
    return %arg0, %arg1, %c0_i32 : i32, i32, i32
  }
  func.func @transform_2(%arg0: i32, %arg1: i32) -> (i32, i32, i32) {
    %c0_i32 = arith.constant 0 : i32
    %c0_i32_0 = arith.constant 0 : i32
    return %arg0, %c0_i32, %arg1 : i32, i32, i32
  }
  func.func @transform_3(%arg0: i32, %arg1: i32) -> (i32, i32, i32) {
    %c0_i32 = arith.constant 0 : i32
    %c0_i32_0 = arith.constant 0 : i32
    %c0_i32_1 = arith.constant 0 : i32
    %c0_i32_2 = arith.constant 0 : i32
    return %c0_i32, %c0_i32_0, %c0_i32_1 : i32, i32, i32
  }
  func.func @transform_4(%arg0: i32, %arg1: i32) -> (i32, i32, i32) {
    %c0_i32 = arith.constant 0 : i32
    %c0_i32_0 = arith.constant 0 : i32
    %c0_i32_1 = arith.constant 0 : i32
    return %arg0, %c0_i32, %c0_i32_0 : i32, i32, i32
  }
}

</mosaic_0001>

<llo_original>
// kernel: tpu_custom_call.1
$region0: #{tpu_custom_call.1}
  #allocation0 [shape = 'u32[]', space=smem, size = 0x4, offset = 0x4, fixed_abs, tag = 'smem constant byte address 0x4 - core index']
  #allocation1 [shape = 'u32[144,128]{1,0:T(1,128)}', space=vmem, size = 0x12000, scoped, tag = 'internal scratch']
  #allocation2 [shape = 'f32[1,1,32]{2,1,0:T(1,128)}', space=vmem, size = 0x200, scoped, tag = 'scratch operand']
  #allocation3 [shape = 'f32[1,1,1]{2,1,0:T(1,128)}', space=vmem, size = 0x200, scoped, tag = 'scratch operand']
  #allocation4 [shape = 'f32[1,1,1]{2,1,0:T(1,128)}', space=vmem, size = 0x200, scoped, tag = 'scratch operand']
  #allocation5 [shape = 'f32[1]{0:T(128)S(6)}', space=smem, size = 0x200, scoped, tag = 'scoped memory for tpu_custom_call.1']
  %s0 = inlined_call_operand.<no memory space> [shape: f32[1], index: 0, kind: input, shape index: {}]
  %s1 = inlined_call_operand.hbm [shape: f32[2,8,32], index: 1, kind: input, shape index: {}]
  %s2 = inlined_call_operand.vmem [shape: bf16[2,1,8], index: 2, kind: input, shape index: {}]
  %s3 = inlined_call_operand.vmem [shape: f32[1,1,32], index: 3, kind: input, shape index: {}]
  %s4 = inlined_call_operand.hbm [shape: f32[2,1,32], index: 4, kind: output, shape index: {}]
  %s5 = sld [smem:[#allocation0]]
  $region61: #{tpu_custom_call.1} parent=0
    _
  %s7 = ssub.s32 1, %s5
  %s8 = scalar_select 0, %s7, %s5
  %9 = sst [smem:[#allocation5]] %s0
  $region1: #{tpu_custom_call.1} parent=0
    #allocation6 [shape = 'u8[8192]{0}', space=vmem, size = 0x2000, scoped, tag = 'input window, operand 1']
    #allocation7 [shape = 's32[2]{0}', space=sflag, size = 0x8, scoped, tag = 'scoped memory for tpu_custom_call.1']
    #allocation8 [shape = 's32[2]{0}', space=sflag, size = 0x8, scoped, tag = 'scoped memory for tpu_custom_call.1']
    #allocation9 [shape = 'u8[1024]{0}', space=vmem, size = 0x400, scoped, tag = 'output window, operand 0']
    %10 = vsyncpa [#allocation7], 0
    %s11 = scalar_lea.sflag [#allocation7], 1
    %12 = vsyncpa %s11, 0
    %13 = vsyncpa [#allocation8], 0
    %s14 = scalar_lea.sflag [#allocation8], 1
    %15 = vsyncpa %s14, 0
    loop: start=0, step=1, limit=4
    $region2: #{tpu_custom_call.1} parent=1 // loop_pre_header
      _
    $region3: #{tpu_custom_call.1} parent=1 // loop_header
      %s17 = sphi 0, %s21
      %p18 = scmp.ge.s32.totalorder %s17, 4
      %s24 = sphi 0, %s36
      %s25 = sphi 0, %s32
      %s26 = sphi 0, %s24
      %s27 = sphi 0, %s25
      %s28 = sphi 0, %s26
      %s29 = sphi 0, %s27
      %s37 = sphi 0, %s37
      %s39 = sphi 0, %s37
      %s40 = sphi 0, %s39
      %s54 = sphi 0, %s40
      %s62 = sphi 0, %s64
      %s65 = sphi 0, %s62
      %s66 = sphi 0, %s65
      %s82 = sphi 0, %s66
      %s90 = sphi 0, %s92
      %s93 = sphi 0, %s90
      %s94 = sphi 0, %s93
      %s110 = sphi 0, %s94
      %s114 = sphi 0, %s114
      %s116 = sphi 0, %s114
      %s117 = sphi 0, %s116
      %s131 = sphi 0, %s117
      %s137 = sphi 0, %s139
      %s140 = sphi 0, %s137
      %s141 = sphi 0, %s140
      %s157 = sphi 0, %s141
    $region4: #{tpu_custom_call.1} parent=1 // loop_header_branch
      %20 = sbr.rel (%p18) target = $region8
    $region5: #{tpu_custom_call.1} parent=1 // loop_body
      %s22 = ssub.s32 %s17, 1
      %s23 = ssub.s32 %s17, 2
      %s30 = sadd.s32 1, %s25
      %p31 = scmp.ge.s32.totalorder %s30, 1
      %s32 = scalar_select %p31, 0, %s30
      %s33 = sadd.s32 1, %s24
      %s34 = scalar_select %p31, %s33, %s24
      %p35 = scmp.ge.s32.totalorder %s34, 2
      %s36 = scalar_select %p35, 0, %s34
      %s38 = sadd.s32 %s37, 1
      %p41 = scmp.eq.s32.totalorder %s17, 1
      %p42 = scmp.ne.s32.totalorder %s37, %s39
      %p43 = scmp.eq.s32.totalorder %s17, 0
      %p44 = por %p42, %p43
      %p45 = scmp.ne.s32.totalorder %s37, %s39
      %p46 = scmp.eq.s32.totalorder %s22, 1
      %p47 = por %p45, %p46
      %p48 = scmp.ne.s32.totalorder %s39, %s40
      %p49 = scmp.eq.s32.totalorder %s22, 0
      %p50 = por %p48, %p49
      %p51 = scmp.ne.s32.totalorder %s39, %s40
      %p52 = scmp.eq.s32.totalorder %s23, 1
      %p53 = por %p51, %p52
      %p55 = scmp.ne.s32.totalorder %s40, %s54
      %p56 = scmp.eq.s32.totalorder %s23, 0
      %p57 = por %p55, %p56
      %s58 = ssub.s32 %s24, %s36
      %s59 = ssub.s32 %s25, %s32
      %s60 = sor.u32 %s58, %s59
      %p61 = scmp.eq.s32.totalorder %s60, 0
      %s63 = sadd.s32 %s62, 1
      %s64 = scalar_select %p61, %s62, %s63
      %p67 = pneg %p61
      %p68 = scmp.eq.s32.totalorder %s17, 1
      %p69 = por %p67, %p68
      %p70 = scmp.ne.s32.totalorder %s62, %s65
      %p71 = scmp.eq.s32.totalorder %s17, 0
      %p72 = por %p70, %p71
      %p73 = scmp.ne.s32.totalorder %s62, %s65
      %p74 = scmp.eq.s32.totalorder %s22, 1
      %p75 = por %p73, %p74
      %p76 = scmp.ne.s32.totalorder %s65, %s66
      %p77 = scmp.eq.s32.totalorder %s22, 0
      %p78 = por %p76, %p77
      %p79 = scmp.ne.s32.totalorder %s65, %s66
      %p80 = scmp.eq.s32.totalorder %s23, 1
      %p81 = por %p79, %p80
      %p83 = scmp.ne.s32.totalorder %s66, %s82
      %p84 = scmp.eq.s32.totalorder %s23, 0
      %p85 = por %p83, %p84
      %s86 = ssub.s32 %s24, %s36
      %s87 = ssub.s32 %s25, %s32
      %s88 = sor.u32 %s86, %s87
      %p89 = scmp.eq.s32.totalorder %s88, 0
      %s91 = sadd.s32 %s90, 1
      %s92 = scalar_select %p89, %s90, %s91
      %p95 = pneg %p89
      %p96 = scmp.eq.s32.totalorder %s17, 1
      %p97 = por %p95, %p96
      %p98 = scmp.ne.s32.totalorder %s90, %s93
      %p99 = scmp.eq.s32.totalorder %s17, 0
      %p100 = por %p98, %p99
      %p101 = scmp.ne.s32.totalorder %s90, %s93
      %p102 = scmp.eq.s32.totalorder %s22, 1
      %p103 = por %p101, %p102
      %p104 = scmp.ne.s32.totalorder %s93, %s94
      %p105 = scmp.eq.s32.totalorder %s22, 0
      %p106 = por %p104, %p105
      %p107 = scmp.ne.s32.totalorder %s93, %s94
      %p108 = scmp.eq.s32.totalorder %s23, 1
      %p109 = por %p107, %p108
      %p111 = scmp.ne.s32.totalorder %s94, %s110
      %p112 = scmp.eq.s32.totalorder %s23, 0
      %p113 = por %p111, %p112
      %s115 = sadd.s32 %s114, 1
      %p118 = scmp.eq.s32.totalorder %s17, 1
      %p119 = scmp.ne.s32.totalorder %s114, %s116
      %p120 = scmp.eq.s32.totalorder %s17, 0
      %p121 = por %p119, %p120
      %p122 = scmp.ne.s32.totalorder %s114, %s116
      %p123 = scmp.eq.s32.totalorder %s22, 1
      %p124 = por %p122, %p123
      %p125 = scmp.ne.s32.totalorder %s116, %s117
      %p126 = scmp.eq.s32.totalorder %s22, 0
      %p127 = por %p125, %p126
      %p128 = scmp.ne.s32.totalorder %s116, %s117
      %p129 = scmp.eq.s32.totalorder %s23, 1
      %p130 = por %p128, %p129
      %p132 = scmp.ne.s32.totalorder %s117, %s131
      %p133 = scmp.eq.s32.totalorder %s23, 0
      %p134 = por %p132, %p133
      %s135 = ssub.s32 %s24, %s36
      %p136 = scmp.eq.s32.totalorder %s135, 0
      %s138 = sadd.s32 %s137, 1
      %s139 = scalar_select %p136, %s137, %s138
      %p142 = pneg %p136
      %p143 = scmp.eq.s32.totalorder %s17, 1
      %p144 = por %p142, %p143
      %p145 = scmp.ne.s32.totalorder %s137, %s140
      %p146 = scmp.eq.s32.totalorder %s17, 0
      %p147 = por %p145, %p146
      %p148 = scmp.ne.s32.totalorder %s137, %s140
      %p149 = scmp.eq.s32.totalorder %s22, 1
      %p150 = por %p148, %p149
      %p151 = scmp.ne.s32.totalorder %s140, %s141
      %p152 = scmp.eq.s32.totalorder %s22, 0
      %p153 = por %p151, %p152
      %p154 = scmp.ne.s32.totalorder %s140, %s141
      %p155 = scmp.eq.s32.totalorder %s23, 1
      %p156 = por %p154, %p155
      %p158 = scmp.ne.s32.totalorder %s141, %s157
      %p159 = scmp.eq.s32.totalorder %s23, 0
      %p160 = por %p158, %p159
      %p161 = scmp.le.s32.totalorder 1, %s17
      %p162 = scmp.lt.s32.totalorder %s17, 3
      %p163 = pnand %p161, %p162
      %p164 = pneg %p163
      // Predicated region
      $region9: #{tpu_custom_call.1} parent=5 // pred_check
        _
      $region10: #{tpu_custom_call.1} parent=5 // pred_check_branch
        %166 = sbr.rel (%p163) target = $region12
      $region11: #{tpu_custom_call.1} parent=5 // pred_region
        %s167 = ssub.s32 %s17, 1
        // Predicated region
        $region13: #{tpu_custom_call.1} parent=11 // pred_check
          %p168 = pneg %p50
        $region14: #{tpu_custom_call.1} parent=11 // pred_check_branch
          %170 = sbr.rel (%p168) target = $region16
        $region15: #{tpu_custom_call.1} parent=11 // pred_region
          _
        $region16: #{tpu_custom_call.1} parent=11 // pred_fallthru
          _
        // Predicated region
        $region17: #{tpu_custom_call.1} parent=11 // pred_check
          %p171 = pneg %p127
        $region18: #{tpu_custom_call.1} parent=11 // pred_check_branch
          %173 = sbr.rel (%p171) target = $region20
        $region19: #{tpu_custom_call.1} parent=11 // pred_region
          _
        $region20: #{tpu_custom_call.1} parent=11 // pred_fallthru
          _
      $region12: #{tpu_custom_call.1} parent=5 // pred_fallthru
        _
      %p174 = scmp.lt.s32.totalorder %s17, 2
      // Predicated region
      $region21: #{tpu_custom_call.1} parent=5 // pred_check
        %p175 = pneg %p174
      $region22: #{tpu_custom_call.1} parent=5 // pred_check_branch
        %177 = sbr.rel (%p175) target = $region24
      $region23: #{tpu_custom_call.1} parent=5 // pred_region
        // Predicated region
        $region25: #{tpu_custom_call.1} parent=23 // pred_check
          %p178 = pneg %p72
        $region26: #{tpu_custom_call.1} parent=23 // pred_check_branch
          %180 = sbr.rel (%p178) target = $region28
        $region27: #{tpu_custom_call.1} parent=23 // pred_region
          %s181 = sand.u32 %s62, 1
          %s182 = scalar_lea.sflag [#allocation7], %s181
          %s183 = sand.u32 %s62, 1
          %s184 = smul.addr %s183, 8
          %s185 = scalar_lea.vmem [#allocation6], %s184
          %s187 = ssub.s32 128, 128
          %188 = vsyncadd %s182, %s187
          %s189 = sadd.s32 %s25, %s24
          %s190 = smul.addr %s189, 128
          %s191 = scalar_lea.hbm %s1, %s190
          %s193 = sshll.u32 %s185, 4
          %s194 = int_to_ptr.vmem [resolvable:$true] %s193
          %196 = dma.hbm_to_vmem [thread:$0]  %s191, 128, %s194, %s182
        $region28: #{tpu_custom_call.1} parent=23 // pred_fallthru
          _
        // Predicated region
        $region29: #{tpu_custom_call.1} parent=23 // pred_check
          %p197 = pneg %p100
        $region30: #{tpu_custom_call.1} parent=23 // pred_check_branch
          %199 = sbr.rel (%p197) target = $region32
        $region31: #{tpu_custom_call.1} parent=23 // pred_region
          %p200 = scmp.lt.s32.totalorder %s24, 1
          %s201 = scalar_select %p200, %s24, 1
          %p202 = scmp.lt.s32.totalorder %s25, 0
          %s203 = scalar_select %p202, %s25, 0
          %s204 = sadd.s32 %s203, %s201
          %s205 = scalar_lea.vmem %s2, %s204
        $region32: #{tpu_custom_call.1} parent=23 // pred_fallthru
          _
      $region24: #{tpu_custom_call.1} parent=5 // pred_fallthru
        _
      %p206 = scmp.le.s32.totalorder 1, %s17
      %p207 = scmp.lt.s32.totalorder %s17, 3
      %p208 = pnand %p206, %p207
      %p209 = pneg %p208
      // Predicated region
      $region33: #{tpu_custom_call.1} parent=5 // pred_check
        _
      $region34: #{tpu_custom_call.1} parent=5 // pred_check_branch
        %211 = sbr.rel (%p208) target = $region36
      $region35: #{tpu_custom_call.1} parent=5 // pred_region
        %s212 = ssub.s32 %s17, 1
        %s213 = sand.u32 %s65, 1
        %s214 = scalar_lea.sflag [#allocation7], %s213
        %s215 = sand.u32 %s65, 1
        %s216 = smul.addr %s215, 8
        %s217 = scalar_lea.vmem [#allocation6], %s216
        // Predicated region
        $region37: #{tpu_custom_call.1} parent=35 // pred_check
          %p218 = pneg %p78
        $region38: #{tpu_custom_call.1} parent=35 // pred_check_branch
          %220 = sbr.rel (%p218) target = $region40
        $region39: #{tpu_custom_call.1} parent=35 // pred_region
          %221 = dma.done %s214, 128
        $region40: #{tpu_custom_call.1} parent=35 // pred_fallthru
          _
        %p222 = pneg %p50
        %p223 = pneg %p47
        %s224 = sand.u32 %s65, 1
        %s225 = scalar_lea.sflag [#allocation7], %s224
        %s226 = sand.u32 %s65, 1
        %s227 = smul.addr %s226, 8
        %s228 = scalar_lea.vmem [#allocation6], %s227
        %p229 = pneg %p78
        %p230 = pneg %p75
        %p231 = scmp.lt.s32.totalorder %s26, 1
        %s232 = scalar_select %p231, %s26, 1
        %p233 = scmp.lt.s32.totalorder %s27, 0
        %s234 = scalar_select %p233, %s27, 0
        %s235 = sadd.s32 %s234, %s232
        %s236 = scalar_lea.vmem %s2, %s235
        %p237 = pneg %p106
        %p238 = pneg %p103
        %p239 = pneg %p127
        %p240 = pneg %p124
        %p241 = pneg %p153
        %p242 = pneg %p150
        %s243 = sand.u32 %s140, 1
        %s244 = scalar_lea.sflag [#allocation8], %s243
        %s245 = sand.u32 %s140, 1
        %s246 = scalar_lea.vmem [#allocation9], %s245
        %p247 = scmp.lt.s32.totalorder %s26, 1
        %s248 = scalar_select %p247, %s26, 1
        %p249 = scmp.lt.s32.totalorder %s27, 0
        %s250 = scalar_select %p249, %s27, 0
        %s251 = sadd.s32 %s250, %s248
        %s252 = scalar_lea.vmem %s2, %s251
        %p256 = scmp.eq.s32.totalorder %s27, 0
        // Predicated region
        $region41: #{tpu_custom_call.1} parent=35 // pred_check
          %p257 = pneg %p256
        $region42: #{tpu_custom_call.1} parent=35 // pred_check_branch
          %259 = sbr.rel (%p257) target = $region44
        $region43: #{tpu_custom_call.1} parent=35 // pred_region
          %vm260 = vcmask 253952
          %261 = vst.msk [vmem:[#allocation2] sm:$0x1] %vm260, 0.0
          %vm262 = vcmask 0
          %263 = vst.msk [vmem:[#allocation3] sm:$0x1] %vm262, -inf
          %264 = vst.msk [vmem:[#allocation4] sm:$0x1] %vm262, 0.0
        $region44: #{tpu_custom_call.1} parent=35 // pred_fallthru
          _
        %v265 = vld [vmem:[%s217] sm:$0xff]
        %v266 = vld [vmem:[%s252] sm:$0x1]
        %v267 = vld [vmem:[%s3] sm:$0x1]
        %s268 = sld [smem:[#allocation5]]
        %v269 = vstv %s268
        %vm270 = vcmask 261120
        %v272 = vsel %vm270, %v267, 0
        %v275 = vsel %vm270, %v265, 0
        %277 = vmatprep.subr.mxu0 0.0
        %278 = vmatpush1.xpose.msra.mxu0 %v275
        %279 = vmatprep.subr.mxu0 0.0
        %280 = vmatpush1.xpose.msra.mxu0 0.0
        %281 = vmatprep.subr.mxu0 0.0
        %282 = vmatpush1.xpose.msra.mxu0 0.0
        %283 = vmatprep.subr.mxu0 0.0
        %284 = vmatpush1.xpose.msra.mxu0 0.0
        %285 = vmatprep.subr.mxu0 0.0
        %286 = vmatpush1.xpose.msra.mxu0 0.0
        %287 = vmatprep.subr.mxu0 0.0
        %288 = vmatpush1.xpose.msra.mxu0 0.0
        %289 = vmatprep.subr.mxu0 0.0
        %290 = vmatpush1.xpose.msra.mxu0 0.0
        %291 = vmatprep.subr.mxu0 0.0
        %292 = vmatpush1.xpose.msra.mxu0 0.0
        %293 = vmatprep.subr.mxu0 0.0
        %294 = vmatpush1.xpose.msra.mxu0 0.0
        %295 = vmatprep.subr.mxu0 0.0
        %296 = vmatpush1.xpose.msra.mxu0 0.0
        %297 = vmatprep.subr.mxu0 0.0
        %298 = vmatpush1.xpose.msra.mxu0 0.0
        %299 = vmatprep.subr.mxu0 0.0
        %300 = vmatpush1.xpose.msra.mxu0 0.0
        %301 = vmatprep.subr.mxu0 0.0
        %302 = vmatpush1.xpose.msra.mxu0 0.0
        %303 = vmatprep.subr.mxu0 0.0
        %304 = vmatpush1.xpose.msra.mxu0 0.0
        %305 = vmatprep.subr.mxu0 0.0
        %306 = vmatpush1.xpose.msra.mxu0 0.0
        %307 = vmatprep.subr.mxu0 0.0
        %308 = vmatpush1.xpose.msra.mxu0 0.0
        %309 = vmatprep.subr.mxu0 0.0
        %310 = vmatpush1.xpose.msra.mxu0 0.0
        %311 = vmatprep.subr.mxu0 0.0
        %312 = vmatpush1.xpose.msra.mxu0 0.0
        %313 = vmatprep.subr.mxu0 0.0
        %314 = vmatpush1.xpose.msra.mxu0 0.0
        %315 = vmatprep.subr.mxu0 0.0
        %316 = vmatpush1.xpose.msra.mxu0 0.0
        %317 = vmatprep.subr.mxu0 0.0
        %318 = vmatpush1.xpose.msra.mxu0 0.0
        %319 = vmatprep.subr.mxu0 0.0
        %320 = vmatpush1.xpose.msra.mxu0 0.0
        %321 = vmatprep.subr.mxu0 0.0
        %322 = vmatpush1.xpose.msra.mxu0 0.0
        %323 = vmatprep.subr.mxu0 0.0
        %324 = vmatpush1.xpose.msra.mxu0 0.0
        %325 = vmatprep.subr.mxu0 0.0
        %326 = vmatpush1.xpose.msra.mxu0 0.0
        %327 = vmatprep.subr.mxu0 0.0
        %328 = vmatpush1.xpose.msra.mxu0 0.0
        %329 = vmatprep.subr.mxu0 0.0
        %330 = vmatpush1.xpose.msra.mxu0 0.0
        %331 = vmatprep.subr.mxu0 0.0
        %332 = vmatpush1.xpose.msra.mxu0 0.0
        %333 = vmatprep.subr.mxu0 0.0
        %334 = vmatpush1.xpose.msra.mxu0 0.0
        %335 = vmatprep.subr.mxu0 0.0
        %336 = vmatpush1.xpose.msra.mxu0 0.0
        %337 = vmatprep.subr.mxu0 0.0
        %338 = vmatpush1.xpose.msra.mxu0 0.0
        %339 = vmatprep.subr.mxu0 0.0
        %340 = vmatpush1.xpose.msra.mxu0 0.0
        %341 = vmatprep.mubr.f32.mxu0 0.0
        %342 = vmatmul.mubr.f32.gmra.mrb[0].mxu0 %v272
        %v343 = vpop.f32.mrb[0].mxu0
        %v344 = vadd.f32 %v269, %v343
        %v345 = vpop.f32.mrb[0].mxu0
        %346 = vdwg.mxu0
        %vm347 = vcmp.eq.bf16.partialorder %v266, 0
        %v348 = vsel %vm347, 65537, 0
        %v349 = vunpack.c.l.b16 %v348
        %vm350 = vcmp.ne.s32.totalorder %v349, 0
        %v351 = vsel %vm350, -1e+09, %v344
        %v352 = vld [vmem:[#allocation3] sm:$0x1]
        %vm353 = vcmask 57344
        %v354 = vsel %vm353, %v351, -inf
        %355 = vmax.xlane.f32.xlu0 %v354
        %v356 = vpop.xlane.xlu0 %355
        %v357 = vmax.f32 %v352, %v356
        %v358 = vsub.f32 %v352, %v357
        %v359 = vmul.f32 %v358, 1.442695
        %v360 = vpow.pop %v359
        %362 = vset.pattern.permute.xlu0 0
        %363 = vperm.xlu0 %362, %v357
        %v364 = vpop.permute.xlu0 %363
        %v366 = vlaneseq
        %v367 = vshrl.u32 %v366, 7
        %v368 = vsub.s32 0, %v367
        %v369 = vrot.slane %v364, %v368
        %v370 = vsub.f32 %v351, %v369
        %v371 = vmul.f32 %v370, 1.442695
        %v372 = vpow.pop %v371
        %v373 = vld [vmem:[#allocation4] sm:$0x1]
        %v374 = vmul.f32 %v360, %v373
        %v375 = vsel %vm353, %v372, 0.0
        %376 = vadd.xlane.f32.xlu0 %v375
        %v377 = vpop.xlane.xlu0 %376
        %v378 = vadd.f32 %v374, %v377
        %vm379 = vcmask 0
        %380 = vst.msk [vmem:[#allocation4] sm:$0x1] %vm379, %v378
        %v381 = vld [vmem:[#allocation2] sm:$0x1]
        %383 = vset.pattern.permute.xlu0 0
        %384 = vperm.xlu0 %383, %v360
        %v385 = vpop.permute.xlu0 %384
        %v387 = vlaneseq
        %v388 = vshrl.u32 %v387, 7
        %v389 = vsub.s32 0, %v388
        %v390 = vrot.slane %v385, %v389
        %v391 = vmul.f32 %v390, %v381
        %vm392 = vcmask 64512
        %v394 = vsel %vm392, %v372, 0
        %396 = vmatprep.subr.mxu0 0.0
        %397 = vmatpush1.msra.mxu0 %v265
        %398 = vmatprep.subr.mxu0 0.0
        %399 = vmatpush1.msra.mxu0 0.0
        %400 = vmatprep.subr.mxu0 0.0
        %401 = vmatpush1.msra.mxu0 0.0
        %402 = vmatprep.subr.mxu0 0.0
        %403 = vmatpush1.msra.mxu0 0.0
        %404 = vmatprep.subr.mxu0 0.0
        %405 = vmatpush1.msra.mxu0 0.0
        %406 = vmatprep.subr.mxu0 0.0
        %407 = vmatpush1.msra.mxu0 0.0
        %408 = vmatprep.subr.mxu0 0.0
        %409 = vmatpush1.msra.mxu0 0.0
        %410 = vmatprep.subr.mxu0 0.0
        %411 = vmatpush1.msra.mxu0 0.0
        %412 = vmatprep.subr.mxu0 0.0
        %413 = vmatpush1.msra.mxu0 0.0
        %414 = vmatprep.subr.mxu0 0.0
        %415 = vmatpush1.msra.mxu0 0.0
        %416 = vmatprep.subr.mxu0 0.0
        %417 = vmatpush1.msra.mxu0 0.0
        %418 = vmatprep.subr.mxu0 0.0
        %419 = vmatpush1.msra.mxu0 0.0
        %420 = vmatprep.subr.mxu0 0.0
        %421 = vmatpush1.msra.mxu0 0.0
        %422 = vmatprep.subr.mxu0 0.0
        %423 = vmatpush1.msra.mxu0 0.0
        %424 = vmatprep.subr.mxu0 0.0
        %425 = vmatpush1.msra.mxu0 0.0
        %426 = vmatprep.subr.mxu0 0.0
        %427 = vmatpush1.msra.mxu0 0.0
        %428 = vmatprep.subr.mxu0 0.0
        %429 = vmatpush1.msra.mxu0 0.0
        %430 = vmatprep.subr.mxu0 0.0
        %431 = vmatpush1.msra.mxu0 0.0
        %432 = vmatprep.subr.mxu0 0.0
        %433 = vmatpush1.msra.mxu0 0.0
        %434 = vmatprep.subr.mxu0 0.0
        %435 = vmatpush1.msra.mxu0 0.0
        %436 = vmatprep.subr.mxu0 0.0
        %437 = vmatpush1.msra.mxu0 0.0
        %438 = vmatprep.subr.mxu0 0.0
        %439 = vmatpush1.msra.mxu0 0.0
        %440 = vmatprep.subr.mxu0 0.0
        %441 = vmatpush1.msra.mxu0 0.0
        %442 = vmatprep.subr.mxu0 0.0
        %443 = vmatpush1.msra.mxu0 0.0
        %444 = vmatprep.subr.mxu0 0.0
        %445 = vmatpush1.msra.mxu0 0.0
        %446 = vmatprep.subr.mxu0 0.0
        %447 = vmatpush1.msra.mxu0 0.0
        %448 = vmatprep.subr.mxu0 0.0
        %449 = vmatpush1.msra.mxu0 0.0
        %450 = vmatprep.subr.mxu0 0.0
        %451 = vmatpush1.msra.mxu0 0.0
        %452 = vmatprep.subr.mxu0 0.0
        %453 = vmatpush1.msra.mxu0 0.0
        %454 = vmatprep.subr.mxu0 0.0
        %455 = vmatpush1.msra.mxu0 0.0
        %456 = vmatprep.subr.mxu0 0.0
        %457 = vmatpush1.msra.mxu0 0.0
        %458 = vmatprep.subr.mxu0 0.0
        %459 = vmatpush1.msra.mxu0 0.0
        %460 = vmatprep.mubr.f32.mxu0 0.0
        %461 = vmatmul.mubr.f32.gmra.mrb[0].mxu0 %v394
        %v462 = vpop.f32.mrb[0].mxu0
        %v463 = vadd.f32 0.0, %v462
        %v464 = vpop.f32.mrb[0].mxu0
        %465 = vdwg.mxu0
        %v466 = vadd.f32 %v391, %v463
        %vm467 = vcmask 253952
        %468 = vst.msk [vmem:[#allocation2] sm:$0x1] %vm467, %v466
        %469 = vst.msk [vmem:[#allocation3] sm:$0x1] %vm379, %v357
        // Predicated region
        $region45: #{tpu_custom_call.1} parent=35 // pred_check
          %p470 = pneg %p256
        $region46: #{tpu_custom_call.1} parent=35 // pred_check_branch
          %472 = sbr.rel (%p470) target = $region48
        $region47: #{tpu_custom_call.1} parent=35 // pred_region
          %v473 = vld [vmem:[#allocation4] sm:$0x1]
          %v474 = vrcp.pop %v473
          %v475 = vld [vmem:[#allocation2] sm:$0x1]
          %477 = vset.pattern.permute.xlu0 0
          %478 = vperm.xlu0 %477, %v474
          %v479 = vpop.permute.xlu0 %478
          %v481 = vlaneseq
          %v482 = vshrl.u32 %v481, 7
          %v483 = vsub.s32 0, %v482
          %v484 = vrot.slane %v479, %v483
          %v485 = vmul.f32 %v475, %v484
          %486 = vst.msk [vmem:[%s246] sm:$0x1] %vm467, %v485
        $region48: #{tpu_custom_call.1} parent=35 // pred_fallthru
          _
        %s487 = sand.u32 %s140, 1
        %s488 = scalar_lea.sflag [#allocation8], %s487
        %s489 = sand.u32 %s140, 1
        %s490 = scalar_lea.vmem [#allocation9], %s489
        // Predicated region
        $region49: #{tpu_custom_call.1} parent=35 // pred_check
          %p491 = pneg %p150
        $region50: #{tpu_custom_call.1} parent=35 // pred_check_branch
          %493 = sbr.rel (%p491) target = $region52
        $region51: #{tpu_custom_call.1} parent=35 // pred_region
          %s495 = ssub.s32 16, 16
          %496 = vsyncadd %s488, %s495
          %s497 = smul.addr %s26, 16
          %s498 = scalar_lea.hbm %s4, %s497
          %s500 = sshll.u32 %s490, 4
          %s501 = int_to_ptr.vmem [resolvable:$true] %s500
          %503 = dma.vmem_to_hbm [thread:$0]  %s501, 16, %s498, %s488
        $region52: #{tpu_custom_call.1} parent=35 // pred_fallthru
          _
      $region36: #{tpu_custom_call.1} parent=5 // pred_fallthru
        _
      %p504 = scmp.le.s32.totalorder 2, %s17
      // Predicated region
      $region53: #{tpu_custom_call.1} parent=5 // pred_check
        %p505 = pneg %p504
      $region54: #{tpu_custom_call.1} parent=5 // pred_check_branch
        %507 = sbr.rel (%p505) target = $region56
      $region55: #{tpu_custom_call.1} parent=5 // pred_region
        %s508 = ssub.s32 %s17, 2
        // Predicated region
        $region57: #{tpu_custom_call.1} parent=55 // pred_check
          %p509 = pneg %p156
        $region58: #{tpu_custom_call.1} parent=55 // pred_check_branch
          %511 = sbr.rel (%p509) target = $region60
        $region59: #{tpu_custom_call.1} parent=55 // pred_region
          %s512 = sand.u32 %s141, 1
          %s513 = scalar_lea.sflag [#allocation8], %s512
          %s514 = sand.u32 %s141, 1
          %s515 = scalar_lea.vmem [#allocation9], %s514
          %516 = dma.done %s513, 16
        $region60: #{tpu_custom_call.1} parent=55 // pred_fallthru
          _
      $region56: #{tpu_custom_call.1} parent=5 // pred_fallthru
        _
    $region6: #{tpu_custom_call.1} parent=1 // loop_footer
      %s21 = sadd.s32 1, %s17
    $region7: #{tpu_custom_call.1} parent=1 // loop_footer_branch
      %16 = sbr.rel target = $region3
    $region8: #{tpu_custom_call.1} parent=1 // loop_exit
      _
    %517 = vsyncpa [#allocation7], 1
    %s518 = scalar_lea.sflag [#allocation7], 1
    %519 = vsyncpa %s518, 1
    %520 = vsyncpa [#allocation8], 1
    %s521 = scalar_lea.sflag [#allocation8], 1
    %522 = vsyncpa %s521, 1

</llo_original>
